<compile_context>
chip_gen: v5e
topology: v5e:2x2
jax: 0.10.0
libtpu: 0.0.40
codegen_flags: <defaults>
</compile_context>

<pallas_src>
import functools

import numpy as np
import jax
import jax.numpy as jnp
from jax.experimental import pallas as pl
from jax.experimental.pallas import tpu as pltpu

LANE = 128                       # lane dimension of a vreg
SUB = 8                          # sublane dimension of a vreg (f32)
MAX_BLOCK_ROWS = 8192            # 8192 x 128 f32 = 4 MiB per block
VMEM_LIMIT_BYTES = 32 * 1024 * 1024  # explicit: covers 16 MiB f32 footprint on v5e


def _round_up(v, m):
    return -(-v // m) * m


def _row_align(dtype):
    """Sublane alignment for block rows given the I/O dtype packing."""
    itemsize = jnp.dtype(dtype).itemsize
    if itemsize >= 4:
        return SUB          # f32: (8, 128) tiles
    if itemsize == 2:
        return 2 * SUB      # bf16: (16, 128) packed tiles
    return 4 * SUB          # int8 / fp8: (32, 128)


# ---------------------------------------------------------------------------
# Kernel 1: sum(|x|) reduction (step-size initialization)
# ---------------------------------------------------------------------------
def _make_abs_sum_kernel(block_rows, steps_per_core, valid_rows, needs_mask):
    def kernel(x_ref, o_ref, acc_ref):
        c = pl.program_id(0)          # core-split ("parallel") axis
        i = pl.program_id(1)          # reduction ("arbitrary") axis

        @pl.when(i == 0)
        def _():
            acc_ref[...] = jnp.zeros_like(acc_ref)

        absx = jnp.abs(x_ref[...].astype(jnp.float32))
        if needs_mask:
            # Zero padded/phantom rows.  Runs every step; accepted as VALU
            # filler since the kernel is HBM-bound.
            row = (jax.lax.broadcasted_iota(jnp.int32, absx.shape, 0)
                   + (c * steps_per_core + i) * block_rows)
            absx = jnp.where(row < valid_rows, absx, 0.0)

        # Accumulate into a single vreg-shaped scratch tile with VALU adds;
        # the final cross-lane reduce happens on (16,128) in the wrapper.
        acc_ref[...] += jnp.sum(absx.reshape(block_rows // SUB, SUB, LANE),
                                axis=0)

        @pl.when(i == pl.num_programs(1) - 1)
        def _():
            o_ref[...] = acc_ref[...]

    return kernel


@functools.lru_cache(maxsize=None)
def _build_step_size_init(shape, dtype_name, bits):
    """Returns a jitted fn: x -> step_size = 2 * mean(|x|) / sqrt(num_bins)."""
    shape = tuple(int(s) for s in shape)
    dtype = jnp.dtype(dtype_name)
    n = int(np.prod(shape))
    num_bins = 2 ** bits - 1
    # 2 * mean / sqrt(nb) == sum * (2 / (n * sqrt(nb)))  -> fused epilogue
    post = np.float32(2.0 / (float(n) * float(np.sqrt(num_bins))))

    rows_full = n // LANE
    rem = n - rows_full * LANE

    if rows_full == 0:
        # Tensor smaller than one lane row: not worth a kernel launch.
        def tiny(x):
            return (jnp.sum(jnp.abs(x.astype(jnp.float32))) * post
                    ).astype(jnp.float32)
        return jax.jit(tiny)

    align = _row_align(dtype)
    block_rows = min(MAX_BLOCK_ROWS, _round_up(rows_full, align))
    grid_steps = -(-rows_full // block_rows)
    steps_per_core = -(-grid_steps // 2)    # leading size-2 parallel axis
    last_block = grid_steps - 1
    needs_mask = (2 * steps_per_core * block_rows != rows_full)

    call = pl.pallas_call(
        _make_abs_sum_kernel(block_rows, steps_per_core, rows_full, needs_mask),
        out_shape=jax.ShapeDtypeStruct((2 * SUB, LANE), jnp.float32),
        grid=(2, steps_per_core),
        in_specs=[pl.BlockSpec(
            (block_rows, LANE),
            # Clamp phantom blocks of core 1 to the last valid block; their
            # contribution is zeroed by the in-kernel row mask.
            lambda c, i: (jnp.minimum(c * steps_per_core + i, last_block), 0))],
        out_specs=pl.BlockSpec((SUB, LANE), lambda c, i: (c, 0)),
        scratch_shapes=[pltpu.VMEM((SUB, LANE), jnp.float32)],
        compiler_params=pltpu.CompilerParams(
            dimension_semantics=("parallel", "arbitrary"),
            vmem_limit_bytes=VMEM_LIMIT_BYTES),
    )

    def fn(x):
        flat = x.reshape(-1)
        if rem:
            bulk = flat[:rows_full * LANE]          # 128-aligned bulk (no pad)
        else:
            bulk = flat
        partials = call(bulk.reshape(rows_full, LANE))   # (16, 128) per-core tiles
        total = jnp.sum(partials)
        if rem:
            tail = flat[rows_full * LANE:]          # <128-element tail, tiny op
            total = total + jnp.sum(jnp.abs(tail.astype(jnp.float32)))
        return (total * post).astype(jnp.float32)

    return jax.jit(fn)


def step_size_init_pallas(x, bits):
    return _build_step_size_init(tuple(x.shape), jnp.dtype(x.dtype).name,
                                 int(bits))(x)


# ---------------------------------------------------------------------------
# Kernel 2: LSQ quantization forward (activation or weight variant)
# ---------------------------------------------------------------------------
def _make_quant_kernel(bits, is_act):
    num_bins = float(2 ** bits - 1)
    bias = float(-((2 ** bits - 1) // 2) - 1)
    # Bias folded into the clip bounds (weight path).  Exact for bits >= 2
    # because bias = -2^(bits-1) is an even integer, so round() half-to-even
    # ties resolve identically to round(t - bias) + bias.
    lo = 0.0 if is_act else bias
    hi = num_bins if is_act else num_bins + bias

    def kernel(s_ref, x_ref, o_ref):
        scale = s_ref[0]        # scale + eps      (precomputed in wrapper)
        inv_scale = s_ref[1]    # 1 / (scale+eps)  (precomputed in wrapper)
        t = x_ref[...].astype(jnp.float32) * inv_scale
        vbar = jnp.round(jnp.clip(t, lo, hi))
        o_ref[...] = (vbar * scale).astype(o_ref.dtype)

    return kernel


@functools.lru_cache(maxsize=None)
def _build_quant(shape, dtype_name, bits, is_act):
    shape = tuple(int(s) for s in shape)
    dtype = jnp.dtype(dtype_name)
    n = int(np.prod(shape))
    num_bins = float(2 ** bits - 1)
    bias = float(-((2 ** bits - 1) // 2) - 1)
    lo = 0.0 if is_act else bias
    hi = num_bins if is_act else num_bins + bias

    rows_full = n // LANE
    rem = n - rows_full * LANE

    def _quant_jnp(vals, scale_eff, inv_scale):
        t = vals.astype(jnp.float32) * inv_scale
        return (jnp.round(jnp.clip(t, lo, hi)) * scale_eff).astype(dtype)

    if rows_full == 0:
        # Tensor smaller than one lane row: pure XLA fallback.
        def tiny(x, scale):
            scale_eff = scale.astype(jnp.float32) + jnp.float32(1e-07)
            return _quant_jnp(x, scale_eff, 1.0 / scale_eff).reshape(shape)
        return jax.jit(tiny)

    align = _row_align(dtype)
    block_rows = min(MAX_BLOCK_ROWS, _round_up(rows_full, align))
    grid = (-(-rows_full // block_rows),)

    call = pl.pallas_call(
        _make_quant_kernel(bits, is_act),
        out_shape=jax.ShapeDtypeStruct((rows_full, LANE), dtype),  # native dtype
        grid=grid,
        in_specs=[
            pl.BlockSpec(memory_space=pltpu.MemorySpace.SMEM),  # [scale, 1/scale]
            pl.BlockSpec((block_rows, LANE), lambda i: (i, 0)),
        ],
        out_specs=pl.BlockSpec((block_rows, LANE), lambda i: (i, 0)),
        compiler_params=pltpu.CompilerParams(
            dimension_semantics=("parallel",),
            vmem_limit_bytes=VMEM_LIMIT_BYTES),
    )

    def fn(x, scale):
        # Hoist eps-add and reciprocal out of the kernel (scalar XLA ops).
        scale_eff = scale.astype(jnp.float32) + jnp.float32(1e-07)
        inv_scale = 1.0 / scale_eff
        s = jnp.stack([scale_eff, inv_scale])
        flat = x.reshape(-1)
        if rem:
            # Zero-copy on the 128-aligned bulk; tiny fused op on the tail.
            bulk = flat[:rows_full * LANE].reshape(rows_full, LANE)
            out_bulk = call(s, bulk).reshape(-1)
            out_tail = _quant_jnp(flat[rows_full * LANE:], scale_eff, inv_scale)
            return jnp.concatenate([out_bulk, out_tail]).reshape(shape)
        return call(s, flat.reshape(rows_full, LANE)).reshape(shape)

    return jax.jit(fn)


def lsq_quant_pallas(x, scale, bits, is_act):
    return _build_quant(tuple(x.shape), jnp.dtype(x.dtype).name,
                        int(bits), bool(is_act))(
        x, jnp.asarray(scale, jnp.float32))


# ---------------------------------------------------------------------------
# LSQ module (forward-only)
# ---------------------------------------------------------------------------
class LSQ:
    # TODO(synk): backward-pass ctx tensors (mask, ss_gradient) and the
    # step_size gradient path are not materialized (forward semantics only);
    # the one-time "Initializing step size ..." print is also omitted to
    # avoid a host sync.
    # NOTE: self.initialized / self.step_size are eager Python state and are
    # not jax.jit-safe (matches the original PyTorch module's eager behavior).

    def __init__(self, bits, is_act=True):
        self.bits = bits
        self.is_act = is_act
        # nn.Parameter(torch.tensor(1.0)) -> deterministic scalar init
        self.step_size = jnp.float32(1.0)
        self.initialized = False
        self.enable_lsq = True

    def __call__(self, x):
        if not self.enable_lsq:
            return x
        if not self.initialized:
            # step_size <- 2 * mean(|x|) / sqrt(num_bins)  (Pallas reduction,
            # epilogue fused into the same jitted call)
            self.step_size = step_size_init_pallas(x, self.bits)
            self.initialized = True
        return lsq_quant_pallas(x, self.step_size, self.bits, self.is_act)


# ---------------------------------------------------------------------------
# Pure-JAX reference (mirrors the PyTorch forward) for correctness checking
# ---------------------------------------------------------------------------
def _reference(x, bits, is_act):
    x = x.astype(jnp.float32)
    num_bins = 2 ** bits - 1
    scale = 2.0 * jnp.mean(jnp.abs(x)) / np.sqrt(num_bins) + 1e-07
    if is_act:
        t = x / scale
        vbar = jnp.round(jnp.clip(t, 0.0, float(num_bins)))
        return vbar * scale
    else:
        bias = -(num_bins // 2) - 1
        t = x / scale - bias
        vbar = jnp.round(jnp.clip(t, 0.0, float(num_bins)))
        return (vbar + bias) * scale


if __name__ == "__main__":
    key = jax.random.PRNGKey(0)
    # layout: NCHW activation tensor, as in the PyTorch conv convention
    x = jax.random.normal(key, (2, 4, 16, 16), dtype=jnp.float32)

    # activation quantizer
    lsq_a = LSQ(bits=4, is_act=True)
    y_act = lsq_a(x)
    jax.block_until_ready(y_act)

    # weight quantizer
    lsq_w = LSQ(bits=4, is_act=False)
    y_w = lsq_w(x)
    jax.block_until_ready(y_w)

    ref_act = _reference(x, 4, True)
    ref_w = _reference(x, 4, False)
    np.testing.assert_allclose(np.asarray(y_act), np.asarray(ref_act),
                               rtol=1e-5, atol=1e-5)
    np.testing.assert_allclose(np.asarray(y_w), np.asarray(ref_w),
                               rtol=1e-5, atol=1e-5)

    # tiny tensor (< 128 elems): exercises the pure-XLA fallback path
    x_tiny = jax.random.normal(jax.random.PRNGKey(1), (3, 5, 7),
                               dtype=jnp.float32)
    lsq_t = LSQ(bits=4, is_act=True)
    y_tiny = lsq_t(x_tiny)
    jax.block_until_ready(y_tiny)
    np.testing.assert_allclose(np.asarray(y_tiny),
                               np.asarray(_reference(x_tiny, 4, True)),
                               rtol=1e-5, atol=1e-5)

    # ragged tensor (> 128 elems, not a multiple of 128): exercises the
    # zero-copy bulk + tail split
    x_odd = jax.random.normal(jax.random.PRNGKey(2), (7, 37),
                              dtype=jnp.float32)
    lsq_o = LSQ(bits=4, is_act=False)
    y_odd = lsq_o(x_odd)
    jax.block_until_ready(y_odd)
    np.testing.assert_allclose(np.asarray(y_odd),
                               np.asarray(_reference(x_odd, 4, False)),
                               rtol=1e-5, atol=1e-5)

    # bf16 input: exercises native-dtype I/O with (16,128) row alignment.
    # Loose sanity check only (bf16 output cast + rare one-bin differences).
    x_bf = jax.random.normal(jax.random.PRNGKey(3), (4, 64, 64),
                             dtype=jnp.bfloat16)
    lsq_b = LSQ(bits=4, is_act=True)
    y_bf = lsq_b(x_bf)
    jax.block_until_ready(y_bf)
    np.testing.assert_allclose(np.asarray(y_bf, dtype=np.float32),
                               np.asarray(_reference(x_bf, 4, True)),
                               rtol=0.0, atol=0.5)

    print("KERNEL_OK")
</pallas_src>

<mosaic_0001>
module attributes {stable_mosaic.version = 11 : i64} {
  func.func @kernel(%arg0: i32, %arg1: i32, %arg2: memref<16x128xf32, #tpu.memory_space<vmem>>, %arg3: memref<8x128xf32, #tpu.memory_space<vmem>>, %arg4: memref<8x128xf32, #tpu.memory_space<vmem>>) attributes {dimension_semantics = [#tpu.dimension_semantics<parallel>, #tpu.dimension_semantics<arbitrary>], iteration_bounds = array<i64: 2, 1>, scalar_prefetch = 0 : i64, scratch_operands = 1 : i64, tpu.core_type = #tpu.core_type<tc>, window_params = [{transform_indices = @transform_0, window_bounds = array<i64: 16, 128>}, {transform_indices = @transform_1, window_bounds = array<i64: 8, 128>}]} {
    %c0_i32 = arith.constant 0 : i32
    %0 = arith.cmpi eq, %arg1, %c0_i32 : i32
    %1 = arith.extui %0 : i1 to i32
    %c0_i32_0 = arith.constant 0 : i32
    %2 = arith.cmpi ne, %1, %c0_i32_0 : i32
    scf.if %2 {
      %cst_10 = arith.constant 0.000000e+00 : f32
      %23 = vector.broadcast %cst_10 : f32 to vector<8x128xf32>
      %c0_11 = arith.constant 0 : index
      %c0_12 = arith.constant 0 : index
      %24 = vector.load %arg4[%c0_11, %c0_12] : memref<8x128xf32, #tpu.memory_space<vmem>>, vector<8x128xf32>
      tpu.vector_store %arg4[%c0_11, %c0_12], %23 {strides = array<i32>} : memref<8x128xf32, #tpu.memory_space<vmem>>, vector<8x128xf32>,
    } else {
    }
    %c0 = arith.constant 0 : index
    %c0_1 = arith.constant 0 : index
    %3 = vector.load %arg2[%c0, %c0_1] : memref<16x128xf32, #tpu.memory_space<vmem>>, vector<16x128xf32>
    %4 = math.absf %3 : vector<16x128xf32>
    %5 = tpu.iota {dimensions = array<i32: 0>} : vector<16x128xi32>
    %c1_i32 = arith.constant 1 : i32
    %6 = arith.muli %arg0, %c1_i32 : i32
    %7 = arith.addi %6, %arg1 : i32
    %c16_i32 = arith.constant 16 : i32
    %8 = arith.muli %7, %c16_i32 : i32
    %9 = vector.broadcast %8 : i32 to vector<16x128xi32>
    %10 = arith.addi %5, %9 : vector<16x128xi32>
    %c16_i32_2 = arith.constant 16 : i32
    %11 = vector.broadcast %c16_i32_2 : i32 to vector<16x128xi32>
    %12 = arith.cmpi slt, %10, %11 : vector<16x128xi32>
    %cst = arith.constant 0.000000e+00 : f32
    %13 = vector.broadcast %cst : f32 to vector<16x128xf32>
    %14 = arith.select %12, %4, %13 : vector<16x128xi1>, vector<16x128xf32>
    %c0_3 = arith.constant 0 : index
    %c0_4 = arith.constant 0 : index
    %15 = vector.load %arg4[%c0_3, %c0_4] : memref<8x128xf32, #tpu.memory_space<vmem>>, vector<8x128xf32>
    %16 = vector.shape_cast %14 : vector<16x128xf32> to vector<2x8x128xf32>
    %cst_5 = arith.constant dense<0.000000e+00> : vector<8x128xf32>
    %17 = vector.multi_reduction <add>, %16, %cst_5 [0] : vector<2x8x128xf32> to vector<8x128xf32>
    %18 = arith.addf %15, %17 : vector<8x128xf32>
    %c0_6 = arith.constant 0 : index
    %c0_7 = arith.constant 0 : index
    %19 = vector.load %arg4[%c0_6, %c0_7] : memref<8x128xf32, #tpu.memory_space<vmem>>, vector<8x128xf32>
    tpu.vector_store %arg4[%c0_6, %c0_7], %18 {strides = array<i32>} : memref<8x128xf32, #tpu.memory_space<vmem>>, vector<8x128xf32>,
    %c0_i32_8 = arith.constant 0 : i32
    %20 = arith.cmpi eq, %arg1, %c0_i32_8 : i32
    %21 = arith.extui %20 : i1 to i32
    %c0_i32_9 = arith.constant 0 : i32
    %22 = arith.cmpi ne, %21, %c0_i32_9 : i32
    scf.if %22 {
      %c0_10 = arith.constant 0 : index
      %c0_11 = arith.constant 0 : index
      %23 = vector.load %arg4[%c0_10, %c0_11] : memref<8x128xf32, #tpu.memory_space<vmem>>, vector<8x128xf32>
      %c0_12 = arith.constant 0 : index
      %c0_13 = arith.constant 0 : index
      %24 = vector.load %arg3[%c0_12, %c0_13] : memref<8x128xf32, #tpu.memory_space<vmem>>, vector<8x128xf32>
      tpu.vector_store %arg3[%c0_12, %c0_13], %23 {strides = array<i32>} : memref<8x128xf32, #tpu.memory_space<vmem>>, vector<8x128xf32>,
    } else {
    }
    return
  }
  func.func @transform_0(%arg0: i32, %arg1: i32) -> (i32, i32) {
    %c1_i32 = arith.constant 1 : i32
    %0 = arith.muli %arg0, %c1_i32 : i32
    %1 = arith.addi %0, %arg1 : i32
    %c0_i32 = arith.constant 0 : i32
    %2 = arith.minsi %1, %c0_i32 : i32
    %c0_i32_0 = arith.constant 0 : i32
    %c0_i32_1 = arith.constant 0 : i32
    return %2, %c0_i32_0 : i32, i32
  }
  func.func @transform_1(%arg0: i32, %arg1: i32) -> (i32, i32) {
    %c0_i32 = arith.constant 0 : i32
    %c0_i32_0 = arith.constant 0 : i32
    return %arg0, %c0_i32 : i32, i32
  }
}

</mosaic_0001>

<llo_original>
// kernel: fn.1
$region0: #{fn.1}
  #allocation0 [shape = 'u32[]', space=smem, size = 0x4, offset = 0x4, fixed_abs, tag = 'smem constant byte address 0x4 - core index']
  #allocation1 [shape = 'u32[72,128]{1,0:T(1,128)}', space=vmem, size = 0x9000, scoped, tag = 'internal scratch']
  #allocation2 [shape = 'f32[8,128]{1,0:T(8,128)}', space=vmem, size = 0x1000, scoped, tag = 'scratch operand']
  %s0 = inlined_call_operand.vmem [shape: f32[16,128], index: 0, kind: input, shape index: {}]
  %s1 = inlined_call_operand.vmem [shape: f32[16,128], index: 1, kind: output, shape index: {}]
  %s2 = sld [smem:[#allocation0]]
  $region45: #{fn.1} parent=0
    _
  %s4 = ssub.s32 1, %s2
  %s5 = scalar_select 0, %s4, %s2
  loop: start=0, step=1, limit=4
  $region2: #{fn.1} parent=0 // loop_pre_header
    _
  $region3: #{fn.1} parent=0 // loop_header
    %s7 = sphi 0, %s11
    %p8 = scmp.ge.s32.totalorder %s7, 4
    %s14 = sphi 0, %s26
    %s15 = sphi 0, %s22
    %s16 = sphi 0, %s14
    %s17 = sphi 0, %s15
    %s18 = sphi 0, %s16
    %s19 = sphi 0, %s17
    %s35 = sphi 0, %s37
    %s38 = sphi 0, %s35
    %s39 = sphi 0, %s38
    %s55 = sphi 0, %s39
    %s61 = sphi 0, %s63
    %s64 = sphi 0, %s61
    %s65 = sphi 0, %s64
    %s81 = sphi 0, %s65
  $region4: #{fn.1} parent=0 // loop_header_branch
    %10 = sbr.rel (%p8) target = $region8
  $region5: #{fn.1} parent=0 // loop_body
    %s12 = ssub.s32 %s7, 1
    %s13 = ssub.s32 %s7, 2
    %s20 = sadd.s32 1, %s15
    %p21 = scmp.ge.s32.totalorder %s20, 1
    %s22 = scalar_select %p21, 0, %s20
    %s23 = sadd.s32 1, %s14
    %s24 = scalar_select %p21, %s23, %s14
    %p25 = scmp.ge.s32.totalorder %s24, 2
    %s26 = scalar_select %p25, 0, %s24
    %s27 = sadd.s32 %s14, %s15
    %p28 = scmp.lt.s32.totalorder %s27, 0
    %s29 = scalar_select %p28, %s27, 0
    %s30 = sadd.s32 %s26, %s22
    %p31 = scmp.lt.s32.totalorder %s30, 0
    %s32 = scalar_select %p31, %s30, 0
    %s33 = ssub.s32 %s29, %s32
    %p34 = scmp.eq.s32.totalorder %s33, 0
    %s36 = sadd.s32 %s35, 1
    %s37 = scalar_select %p34, %s35, %s36
    %p40 = pneg %p34
    %p41 = scmp.eq.s32.totalorder %s7, 1
    %p42 = por %p40, %p41
    %p43 = scmp.ne.s32.totalorder %s35, %s38
    %p44 = scmp.eq.s32.totalorder %s7, 0
    %p45 = por %p43, %p44
    %p46 = scmp.ne.s32.totalorder %s35, %s38
    %p47 = scmp.eq.s32.totalorder %s12, 1
    %p48 = por %p46, %p47
    %p49 = scmp.ne.s32.totalorder %s38, %s39
    %p50 = scmp.eq.s32.totalorder %s12, 0
    %p51 = por %p49, %p50
    %p52 = scmp.ne.s32.totalorder %s38, %s39
    %p53 = scmp.eq.s32.totalorder %s13, 1
    %p54 = por %p52, %p53
    %p56 = scmp.ne.s32.totalorder %s39, %s55
    %p57 = scmp.eq.s32.totalorder %s13, 0
    %p58 = por %p56, %p57
    %s59 = ssub.s32 %s14, %s26
    %p60 = scmp.eq.s32.totalorder %s59, 0
    %s62 = sadd.s32 %s61, 1
    %s63 = scalar_select %p60, %s61, %s62
    %p66 = pneg %p60
    %p67 = scmp.eq.s32.totalorder %s7, 1
    %p68 = por %p66, %p67
    %p69 = scmp.ne.s32.totalorder %s61, %s64
    %p70 = scmp.eq.s32.totalorder %s7, 0
    %p71 = por %p69, %p70
    %p72 = scmp.ne.s32.totalorder %s61, %s64
    %p73 = scmp.eq.s32.totalorder %s12, 1
    %p74 = por %p72, %p73
    %p75 = scmp.ne.s32.totalorder %s64, %s65
    %p76 = scmp.eq.s32.totalorder %s12, 0
    %p77 = por %p75, %p76
    %p78 = scmp.ne.s32.totalorder %s64, %s65
    %p79 = scmp.eq.s32.totalorder %s13, 1
    %p80 = por %p78, %p79
    %p82 = scmp.ne.s32.totalorder %s65, %s81
    %p83 = scmp.eq.s32.totalorder %s13, 0
    %p84 = por %p82, %p83
    %p85 = scmp.le.s32.totalorder 1, %s7
    %p86 = scmp.lt.s32.totalorder %s7, 3
    %p87 = pnand %p85, %p86
    %p88 = pneg %p87
    // Predicated region
    $region9: #{fn.1} parent=5 // pred_check
      _
    $region10: #{fn.1} parent=5 // pred_check_branch
      %90 = sbr.rel (%p87) target = $region12
    $region11: #{fn.1} parent=5 // pred_region
      %s91 = ssub.s32 %s7, 1
    $region12: #{fn.1} parent=5 // pred_fallthru
      _
    %p92 = scmp.lt.s32.totalorder %s7, 2
    // Predicated region
    $region13: #{fn.1} parent=5 // pred_check
      %p93 = pneg %p92
    $region14: #{fn.1} parent=5 // pred_check_branch
      %95 = sbr.rel (%p93) target = $region16
    $region15: #{fn.1} parent=5 // pred_region
      // Predicated region
      $region17: #{fn.1} parent=15 // pred_check
        %p96 = pneg %p45
      $region18: #{fn.1} parent=15 // pred_check_branch
        %98 = sbr.rel (%p96) target = $region20
      $region19: #{fn.1} parent=15 // pred_region
        %s99 = sadd.s32 %s14, %s15
        %p100 = scmp.lt.s32.totalorder %s99, 0
        %s101 = scalar_select %p100, %s99, 0
        %s102 = smul.u32 2, %s101
        %p103 = scmp.lt.s32.totalorder %s102, 1
        %s104 = scalar_select %p103, %s102, 1
        %s105 = smul.addr %s104, 8
        %s106 = scalar_lea.vmem %s0, %s105
        %s107 = sadd.s32 %s14, %s15
        %p108 = scmp.lt.s32.totalorder %s107, 0
        %s109 = scalar_select %p108, %s107, 0
        %s110 = smul.u32 2, %s109
      $region20: #{fn.1} parent=15 // pred_fallthru
        _
    $region16: #{fn.1} parent=5 // pred_fallthru
      _
    %p111 = scmp.le.s32.totalorder 1, %s7
    %p112 = scmp.lt.s32.totalorder %s7, 3
    %p113 = pnand %p111, %p112
    %p114 = pneg %p113
    // Predicated region
    $region21: #{fn.1} parent=5 // pred_check
      _
    $region22: #{fn.1} parent=5 // pred_check_branch
      %116 = sbr.rel (%p113) target = $region24
    $region23: #{fn.1} parent=5 // pred_region
      %s117 = ssub.s32 %s7, 1
      %s118 = sadd.s32 %s16, %s17
      %p119 = scmp.lt.s32.totalorder %s118, 0
      %s120 = scalar_select %p119, %s118, 0
      %s121 = smul.u32 2, %s120
      %p122 = scmp.lt.s32.totalorder %s121, 1
      %s123 = scalar_select %p122, %s121, 1
      %s124 = smul.addr %s123, 8
      %s125 = scalar_lea.vmem %s0, %s124
      %p126 = pneg %p51
      %p127 = pneg %p48
      %p128 = pneg %p77
      %p129 = pneg %p74
      %p130 = scmp.lt.s32.totalorder %s16, 1
      %s131 = scalar_select %p130, %s16, 1
      %s132 = smul.addr %s131, 8
      %s133 = scalar_lea.vmem %s1, %s132
      %s134 = sadd.s32 %s16, %s17
      %p135 = scmp.lt.s32.totalorder %s134, 0
      %s136 = scalar_select %p135, %s134, 0
      %s137 = smul.u32 2, %s136
      %p138 = scmp.lt.s32.totalorder %s137, 1
      %s139 = scalar_select %p138, %s137, 1
      %s140 = smul.addr %s139, 8
      %s141 = scalar_lea.vmem %s0, %s140
      %s142 = sadd.s32 %s16, %s17
      %p143 = scmp.lt.s32.totalorder %s142, 0
      %s144 = scalar_select %p143, %s142, 0
      %s145 = smul.u32 2, %s144
      %p146 = scmp.lt.s32.totalorder %s16, 1
      %s147 = scalar_select %p146, %s16, 1
      %s148 = smul.addr %s147, 8
      %s149 = scalar_lea.vmem %s1, %s148
      %p150 = scmp.eq.s32.totalorder %s17, 0
      // Predicated region
      $region25: #{fn.1} parent=23 // pred_check
        %p151 = pneg %p150
      $region26: #{fn.1} parent=23 // pred_check_branch
        %153 = sbr.rel (%p151) target = $region28
      $region27: #{fn.1} parent=23 // pred_region
        %154 = vst [vmem:[#allocation2] sm:$0xff] 0.0
      $region28: #{fn.1} parent=23 // pred_fallthru
        _
      %v155 = vld [vmem:[%s141] sm:$0xff]
      %v156 = vld [vmem:[%s141 + $0x8] sm:$0xff]
      %v157 = vand.u32 2147483647, %v155
      %v158 = vand.u32 2147483647, %v156
      %v159 = vlaneseq
      %v160 = vshrl.u32 %v159, 7
      %v161 = vadd.s32 %v160, 8
      %s162 = sadd.s32 %s16, %s17
      %s163 = smul.u32 %s162, 16
      %v164 = vstv %s163
      %v165 = vadd.s32 %v160, %v164
      %v166 = vadd.s32 %v161, %v164
      %vm167 = vcmp.lt.s32.totalorder %v165, 16
      %vm168 = vcmp.lt.s32.totalorder %v166, 16
      %v169 = vsel %vm167, %v157, 0.0
      %v170 = vsel %vm168, %v158, 0.0
      %v171 = vld [vmem:[#allocation2] sm:$0xff]
      %v172 = vadd.f32 %v169, %v170
      %v173 = vadd.f32 %v171, %v172
      %174 = vst [vmem:[#allocation2] sm:$0xff] %v173
      // Predicated region
      $region29: #{fn.1} parent=23 // pred_check
        %p175 = pneg %p150
      $region30: #{fn.1} parent=23 // pred_check_branch
        %177 = sbr.rel (%p175) target = $region32
      $region31: #{fn.1} parent=23 // pred_region
        %v178 = vld [vmem:[#allocation2] sm:$0xff]
        %179 = vst [vmem:[%s149] sm:$0xff] %v178
      $region32: #{fn.1} parent=23 // pred_fallthru
        _
      %p180 = scmp.lt.s32.totalorder %s16, 1
      %s181 = scalar_select %p180, %s16, 1
      %s182 = smul.addr %s181, 8
      %s183 = scalar_lea.vmem %s1, %s182
      // Predicated region
      $region33: #{fn.1} parent=23 // pred_check
        %p184 = pneg %p74
      $region34: #{fn.1} parent=23 // pred_check_branch
        %186 = sbr.rel (%p184) target = $region36
      $region35: #{fn.1} parent=23 // pred_region
        _
      $region36: #{fn.1} parent=23 // pred_fallthru
        _
    $region24: #{fn.1} parent=5 // pred_fallthru
      _
    %p187 = scmp.le.s32.totalorder 2, %s7
    // Predicated region
    $region37: #{fn.1} parent=5 // pred_check
      %p188 = pneg %p187
    $region38: #{fn.1} parent=5 // pred_check_branch
      %190 = sbr.rel (%p188) target = $region40
    $region39: #{fn.1} parent=5 // pred_region
      %s191 = ssub.s32 %s7, 2
      // Predicated region
      $region41: #{fn.1} parent=39 // pred_check
        %p192 = pneg %p80
      $region42: #{fn.1} parent=39 // pred_check_branch
        %194 = sbr.rel (%p192) target = $region44
      $region43: #{fn.1} parent=39 // pred_region
        %p195 = scmp.lt.s32.totalorder %s18, 1
        %s196 = scalar_select %p195, %s18, 1
        %s197 = smul.addr %s196, 8
        %s198 = scalar_lea.vmem %s1, %s197
      $region44: #{fn.1} parent=39 // pred_fallthru
        _
    $region40: #{fn.1} parent=5 // pred_fallthru
      _
  $region6: #{fn.1} parent=0 // loop_footer
    %s11 = sadd.s32 1, %s7
  $region7: #{fn.1} parent=0 // loop_footer_branch
    %6 = sbr.rel target = $region3
  $region8: #{fn.1} parent=0 // loop_exit
    _

</llo_original>
